<compile_context>
chip_gen: v7x
topology: tpu7x:2x2x1
jax: 0.10.0
libtpu: 0.0.40
codegen_flags: <defaults>
</compile_context>

<pallas_src>
import functools

import jax
import jax.numpy as jnp
from jax.experimental import pallas as pl
from jax.experimental.pallas import tpu as pltpu


def _self_attention_kernel(x_ref, wfg_ref, bfg_ref, wv_ref, bv_ref, o_ref,
                           *, gamma, mid):
    TB, T, C = x_ref.shape
    x = x_ref[...]                                   # (TB, T, C) f32, time-major
    x2 = x.reshape(TB * T, C)                        # rows = batch*time

    # fx/gx 1x1 convs fused into one lane-dense bf16 MXU matmul, f32 accumulate.
    fg = jnp.dot(x2.astype(jnp.bfloat16), wfg_ref[...],
                 preferred_element_type=jnp.float32) + bfg_ref[...]   # (TB*T, 2M)

    # fi = softmax(tanh(f)) over the time axis (stable, f32).
    f = jnp.tanh(fg[:, :mid]).reshape(TB, T, mid)
    f = f - jnp.max(f, axis=1, keepdims=True)
    ef = jnp.exp(f)
    denom = jnp.sum(ef, axis=1, keepdims=True)                        # (TB, 1, M)
    fi = ef * pl.reciprocal(denom, approx=True)                       # EUP divide

    gi = jax.nn.sigmoid(fg[:, mid:]).reshape(TB, T, mid)
    aij = (fi * gi).reshape(TB * T, mid)

    # vx 1x1 conv + gated residual.
    oi = jnp.dot(aij.astype(jnp.bfloat16), wv_ref[...],
                 preferred_element_type=jnp.float32) + bv_ref[...]    # (TB*T, C)
    o_ref[...] = (x2 + gamma * oi).reshape(TB, T, C)


def self_attention(x, params, *, gamma=1.0, block_b=None):
    """x: (B, C, T) as in the PyTorch module; returns (B, C, T)."""
    B, C, T = x.shape
    M = params["wf"].shape[0]
    if block_b is None:
        block_b = 2 if B % 2 == 0 else 1   # keep >=2 grid steps for megacore
    assert B % block_b == 0, (B, block_b)

    # XLA-side layout plumbing (cheap, memory-bound): time-major activations,
    # transposed + bf16-cast weights, stacked fx/gx projection.
    x_tm = jnp.transpose(x, (0, 2, 1))                                        # (B, T, C)
    wfg = jnp.concatenate([params["wf"], params["wg"]], axis=0).T             # (C, 2M)
    wfg = wfg.astype(jnp.bfloat16)
    bfg = jnp.concatenate([params["bf"], params["bg"]], axis=0)[None, :]      # (1, 2M) f32
    wv = params["wv"].T.astype(jnp.bfloat16)                                  # (M, C)
    bv = params["bv"][None, :]                                                # (1, C) f32

    kernel = functools.partial(_self_attention_kernel, gamma=gamma, mid=M)
    out_tm = pl.pallas_call(
        kernel,
        out_shape=jax.ShapeDtypeStruct((B, T, C), jnp.float32),
        grid=(B // block_b,),
        in_specs=[
            pl.BlockSpec((block_b, T, C), lambda b: (b, 0, 0)),  # activations
            pl.BlockSpec((C, 2 * M), lambda b: (0, 0)),          # [wf; wg]^T
            pl.BlockSpec((1, 2 * M), lambda b: (0, 0)),          # [bf; bg]
            pl.BlockSpec((M, C), lambda b: (0, 0)),              # wv^T
            pl.BlockSpec((1, C), lambda b: (0, 0)),              # bv
        ],
        out_specs=pl.BlockSpec((block_b, T, C), lambda b: (b, 0, 0)),
        compiler_params=pltpu.CompilerParams(
            dimension_semantics=("parallel",)),
    )(x_tm, wfg, bfg, wv, bv)
    return jnp.transpose(out_tm, (0, 2, 1))                                   # (B, C, T)


def _ref_forward(x, p, gamma):
    """Pure-JAX (f32) mirror of the PyTorch forward (eval mode)."""
    f = jnp.einsum("mc,bct->bmt", p["wf"], x) + p["bf"][None, :, None]
    fi = jax.nn.softmax(jnp.tanh(f), axis=-1)
    gi = jax.nn.sigmoid(
        jnp.einsum("mc,bct->bmt", p["wg"], x) + p["bg"][None, :, None])
    oi = jnp.einsum("cm,bmt->bct", p["wv"], fi * gi) + p["bv"][None, :, None]
    return x + gamma * oi


if __name__ == "__main__":
    # Small but lane-friendly shapes: channel dims are multiples of 128 so the
    # stacked projection (2M = 256) and the residual stay lane-dense.
    B, C, T = 4, 128, 32        # batch, in_channels, sequence length
    M = 128                     # mid_channels
    gamma = 1.0

    key = jax.random.PRNGKey(0)
    kx, kwf, kbf, kwg, kbg, kwv, kbv = jax.random.split(key, 7)

    def uinit(k, shape, fan_in):
        bound = 1.0 / float(fan_in) ** 0.5
        return jax.random.uniform(k, shape, jnp.float32, -bound, bound)

    # PyTorch Conv1d(k=1) parameters with the kernel axis squeezed.
    params = {
        "wf": uinit(kwf, (M, C), C), "bf": uinit(kbf, (M,), C),
        "wg": uinit(kwg, (M, C), C), "bg": uinit(kbg, (M,), C),
        "wv": uinit(kwv, (C, M), M), "bv": uinit(kbv, (C,), M),
    }
    x = jax.random.normal(kx, (B, C, T), jnp.float32)

    fn = jax.jit(functools.partial(self_attention, gamma=gamma))
    out = jax.block_until_ready(fn(x, params))

    ref = _ref_forward(x, params, gamma)
    assert out.shape == (B, C, T), out.shape
    assert jnp.allclose(out, ref, atol=2e-2, rtol=2e-2), (
        float(jnp.max(jnp.abs(out - ref))))
    print("KERNEL_OK")
</pallas_src>

<mosaic_0001>
module attributes {stable_mosaic.version = 11 : i64} {
  func.func @_self_attention_kernel(%arg0: i32, %arg1: memref<2x32x128xf32, #tpu.memory_space<vmem>>, %arg2: memref<128x256xbf16, #tpu.memory_space<vmem>>, %arg3: memref<1x256xf32, #tpu.memory_space<vmem>>, %arg4: memref<128x128xbf16, #tpu.memory_space<vmem>>, %arg5: memref<1x128xf32, #tpu.memory_space<vmem>>, %arg6: memref<2x32x128xf32, #tpu.memory_space<vmem>>) attributes {dimension_semantics = [#tpu.dimension_semantics<parallel>], iteration_bounds = array<i64: 2>, scalar_prefetch = 0 : i64, scratch_operands = 0 : i64, tpu.core_type = #tpu.core_type<tc>, window_params = [{transform_indices = @transform_0, window_bounds = array<i64: 2, 32, 128>}, {pipeline_mode = #tpu.pipeline_mode<synchronous>, transform_indices = @transform_1, window_bounds = array<i64: 128, 256>}, {pipeline_mode = #tpu.pipeline_mode<synchronous>, transform_indices = @transform_2, window_bounds = array<i64: 1, 256>}, {pipeline_mode = #tpu.pipeline_mode<synchronous>, transform_indices = @transform_3, window_bounds = array<i64: 128, 128>}, {pipeline_mode = #tpu.pipeline_mode<synchronous>, transform_indices = @transform_4, window_bounds = array<i64: 1, 128>}, {transform_indices = @transform_5, window_bounds = array<i64: 2, 32, 128>}]} {
    %c0 = arith.constant 0 : index
    %c0_0 = arith.constant 0 : index
    %c0_1 = arith.constant 0 : index
    %0 = vector.load %arg1[%c0, %c0_0, %c0_1] : memref<2x32x128xf32, #tpu.memory_space<vmem>>, vector<2x32x128xf32>
    %1 = vector.shape_cast %0 : vector<2x32x128xf32> to vector<64x128xf32>
    %2 = arith.truncf %1 : vector<64x128xf32> to vector<64x128xbf16>
    %c0_2 = arith.constant 0 : index
    %c0_3 = arith.constant 0 : index
    %3 = vector.load %arg2[%c0_2, %c0_3] : memref<128x256xbf16, #tpu.memory_space<vmem>>, vector<128x256xbf16>
    %cst = arith.constant dense<0.000000e+00> : vector<64x256xf32>
    %4 = tpu.matmul %2, %3, %cst {dimension_numbers = #tpu.dot_dimension_numbers<[1], [0], [0], [1], [0, 0, 1, 1], [], []>} : vector<64x128xbf16>, vector<128x256xbf16>, vector<64x256xf32> -> vector<64x256xf32>
    %c0_4 = arith.constant 0 : index
    %c0_5 = arith.constant 0 : index
    %5 = vector.load %arg3[%c0_4, %c0_5] : memref<1x256xf32, #tpu.memory_space<vmem>>, vector<1x256xf32>
    %6 = vector.broadcast %5 : vector<1x256xf32> to vector<64x256xf32>
    %7 = arith.addf %4, %6 : vector<64x256xf32>
    %8 = vector.extract_strided_slice %7 {offsets = [0, 0], sizes = [64, 128], strides = [1, 1]} : vector<64x256xf32> to vector<64x128xf32>
    %9 = math.tanh %8 : vector<64x128xf32>
    %10 = vector.shape_cast %9 : vector<64x128xf32> to vector<2x32x128xf32>
    %cst_6 = arith.constant dense<0xFF800000> : vector<2x128xf32>
    %11 = vector.multi_reduction <maximumf>, %10, %cst_6 [1] : vector<2x32x128xf32> to vector<2x128xf32>
    %12 = vector.shape_cast %11 : vector<2x128xf32> to vector<2x1x128xf32>
    %13 = vector.broadcast %12 : vector<2x1x128xf32> to vector<2x32x128xf32>
    %14 = arith.subf %10, %13 : vector<2x32x128xf32>
    %15 = math.exp %14 : vector<2x32x128xf32>
    %cst_7 = arith.constant dense<0.000000e+00> : vector<2x128xf32>
    %16 = vector.multi_reduction <add>, %15, %cst_7 [1] : vector<2x32x128xf32> to vector<2x128xf32>
    %17 = vector.shape_cast %16 : vector<2x128xf32> to vector<2x1x128xf32>
    %18 = tpu.reciprocal %17 {approx = true} : vector<2x1x128xf32> -> vector<2x1x128xf32>
    %19 = vector.broadcast %18 : vector<2x1x128xf32> to vector<2x32x128xf32>
    %20 = arith.mulf %15, %19 : vector<2x32x128xf32>
    %21 = vector.extract_strided_slice %7 {offsets = [0, 128], sizes = [64, 128], strides = [1, 1]} : vector<64x256xf32> to vector<64x128xf32>
    %22 = arith.negf %21 : vector<64x128xf32>
    %23 = math.exp %22 : vector<64x128xf32>
    %cst_8 = arith.constant 1.000000e+00 : f32
    %24 = vector.broadcast %cst_8 : f32 to vector<64x128xf32>
    %25 = arith.addf %24, %23 : vector<64x128xf32>
    %26 = arith.divf %24, %25 : vector<64x128xf32>
    %27 = vector.shape_cast %26 : vector<64x128xf32> to vector<2x32x128xf32>
    %28 = arith.mulf %20, %27 : vector<2x32x128xf32>
    %29 = vector.shape_cast %28 : vector<2x32x128xf32> to vector<64x128xf32>
    %30 = arith.truncf %29 : vector<64x128xf32> to vector<64x128xbf16>
    %c0_9 = arith.constant 0 : index
    %c0_10 = arith.constant 0 : index
    %31 = vector.load %arg4[%c0_9, %c0_10] : memref<128x128xbf16, #tpu.memory_space<vmem>>, vector<128x128xbf16>
    %cst_11 = arith.constant dense<0.000000e+00> : vector<64x128xf32>
    %32 = tpu.matmul %30, %31, %cst_11 {dimension_numbers = #tpu.dot_dimension_numbers<[1], [0], [0], [1], [0, 0, 1, 1], [], []>} : vector<64x128xbf16>, vector<128x128xbf16>, vector<64x128xf32> -> vector<64x128xf32>
    %c0_12 = arith.constant 0 : index
    %c0_13 = arith.constant 0 : index
    %33 = vector.load %arg5[%c0_12, %c0_13] : memref<1x128xf32, #tpu.memory_space<vmem>>, vector<1x128xf32>
    %34 = vector.broadcast %33 : vector<1x128xf32> to vector<64x128xf32>
    %35 = arith.addf %32, %34 : vector<64x128xf32>
    %cst_14 = arith.constant 1.000000e+00 : f32
    %36 = vector.broadcast %cst_14 : f32 to vector<64x128xf32>
    %37 = arith.mulf %36, %35 : vector<64x128xf32>
    %38 = arith.addf %1, %37 : vector<64x128xf32>
    %39 = vector.shape_cast %38 : vector<64x128xf32> to vector<2x32x128xf32>
    %c0_15 = arith.constant 0 : index
    %c0_16 = arith.constant 0 : index
    %c0_17 = arith.constant 0 : index
    %40 = vector.load %arg6[%c0_15, %c0_16, %c0_17] : memref<2x32x128xf32, #tpu.memory_space<vmem>>, vector<2x32x128xf32>
    tpu.vector_store %arg6[%c0_15, %c0_16, %c0_17], %39 {strides = array<i32>} : memref<2x32x128xf32, #tpu.memory_space<vmem>>, vector<2x32x128xf32>,
    return
  }
  func.func @transform_0(%arg0: i32) -> (i32, i32, i32) {
    %c0_i32 = arith.constant 0 : i32
    %c0_i32_0 = arith.constant 0 : i32
    %c0_i32_1 = arith.constant 0 : i32
    return %arg0, %c0_i32, %c0_i32_0 : i32, i32, i32
  }
  func.func @transform_1(%arg0: i32) -> (i32, i32) {
    %c0_i32 = arith.constant 0 : i32
    %c0_i32_0 = arith.constant 0 : i32
    %c0_i32_1 = arith.constant 0 : i32
    return %c0_i32, %c0_i32_0 : i32, i32
  }
  func.func @transform_2(%arg0: i32) -> (i32, i32) {
    %c0_i32 = arith.constant 0 : i32
    %c0_i32_0 = arith.constant 0 : i32
    %c0_i32_1 = arith.constant 0 : i32
    return %c0_i32, %c0_i32_0 : i32, i32
  }
  func.func @transform_3(%arg0: i32) -> (i32, i32) {
    %c0_i32 = arith.constant 0 : i32
    %c0_i32_0 = arith.constant 0 : i32
    %c0_i32_1 = arith.constant 0 : i32
    return %c0_i32, %c0_i32_0 : i32, i32
  }
  func.func @transform_4(%arg0: i32) -> (i32, i32) {
    %c0_i32 = arith.constant 0 : i32
    %c0_i32_0 = arith.constant 0 : i32
    %c0_i32_1 = arith.constant 0 : i32
    return %c0_i32, %c0_i32_0 : i32, i32
  }
  func.func @transform_5(%arg0: i32) -> (i32, i32, i32) {
    %c0_i32 = arith.constant 0 : i32
    %c0_i32_0 = arith.constant 0 : i32
    %c0_i32_1 = arith.constant 0 : i32
    return %arg0, %c0_i32, %c0_i32_0 : i32, i32, i32
  }
}

</mosaic_0001>

<llo_original>
// kernel: self_attention.1
$region0: #{self_attention.1}
  #allocation0 [shape = 'u32[]', space=smem, size = 0x4, offset = 0x4, fixed_abs, tag = 'smem constant byte address 0x4 - core index']
  #allocation1 [shape = 'u32[144,128]{1,0:T(1,128)}', space=vmem, size = 0x12000, scoped, tag = 'internal scratch']
  %s0 = inlined_call_operand.vmem [shape: f32[4,32,128], index: 0, kind: input, shape index: {}]
  %s1 = inlined_call_operand.vmem [shape: bf16[128,256], index: 1, kind: input, shape index: {}]
  %s2 = inlined_call_operand.vmem [shape: f32[1,256], index: 2, kind: input, shape index: {}]
  %s3 = inlined_call_operand.vmem [shape: bf16[128,128], index: 3, kind: input, shape index: {}]
  %s4 = inlined_call_operand.vmem [shape: f32[1,128], index: 4, kind: input, shape index: {}]
  %s5 = inlined_call_operand.hbm [shape: f32[4,32,128], index: 5, kind: output, shape index: {}]
  %s6 = sld [smem:[#allocation0]]
  $region53: #{self_attention.1} parent=0
    _
  %s8 = ssub.s32 1, %s6
  %s9 = scalar_select 0, %s8, %s6
  $region1: #{self_attention.1} parent=0
    #allocation2 [shape = 'u8[65536]{0}', space=vmem, size = 0x10000, scoped, tag = 'output window, operand 0']
    #allocation3 [shape = 's32[2]{0}', space=sflag, size = 0x8, scoped, tag = 'scoped memory for self_attention.1']
    %10 = vsyncpa [#allocation3], 0
    %s11 = scalar_lea.sflag [#allocation3], 1
    %12 = vsyncpa %s11, 0
    loop: start=0, step=1, limit=4
    $region2: #{self_attention.1} parent=1 // loop_pre_header
      _
    $region3: #{self_attention.1} parent=1 // loop_header
      %s14 = sphi 0, %s18
      %p15 = scmp.ge.s32.totalorder %s14, 4
      %s24 = sphi 0, %s26
      %s27 = sphi 0, %s24
      %s28 = sphi 0, %s27
      %s44 = sphi 0, %s28
      %s48 = sphi 0, %s48
      %s50 = sphi 0, %s48
      %s51 = sphi 0, %s50
      %s65 = sphi 0, %s51
      %s69 = sphi 0, %s69
      %s71 = sphi 0, %s69
      %s72 = sphi 0, %s71
      %s86 = sphi 0, %s72
      %s90 = sphi 0, %s90
      %s92 = sphi 0, %s90
      %s93 = sphi 0, %s92
      %s107 = sphi 0, %s93
      %s111 = sphi 0, %s111
      %s113 = sphi 0, %s111
      %s114 = sphi 0, %s113
      %s128 = sphi 0, %s114
      %s134 = sphi 0, %s136
      %s137 = sphi 0, %s134
      %s138 = sphi 0, %s137
      %s154 = sphi 0, %s138
    $region4: #{self_attention.1} parent=1 // loop_header_branch
      %17 = sbr.rel (%p15) target = $region8
    $region5: #{self_attention.1} parent=1 // loop_body
      %s19 = ssub.s32 %s14, 1
      %s20 = ssub.s32 %s14, 2
      %s21 = sadd.s32 %s14, 1
      %s22 = ssub.s32 %s14, %s21
      %p23 = scmp.eq.s32.totalorder %s22, 0
      %s25 = sadd.s32 %s24, 1
      %s26 = scalar_select %p23, %s24, %s25
      %p29 = pneg %p23
      %p30 = scmp.eq.s32.totalorder %s14, 1
      %p31 = por %p29, %p30
      %p32 = scmp.ne.s32.totalorder %s24, %s27
      %p33 = scmp.eq.s32.totalorder %s14, 0
      %p34 = por %p32, %p33
      %p35 = scmp.ne.s32.totalorder %s24, %s27
      %p36 = scmp.eq.s32.totalorder %s19, 1
      %p37 = por %p35, %p36
      %p38 = scmp.ne.s32.totalorder %s27, %s28
      %p39 = scmp.eq.s32.totalorder %s19, 0
      %p40 = por %p38, %p39
      %p41 = scmp.ne.s32.totalorder %s27, %s28
      %p42 = scmp.eq.s32.totalorder %s20, 1
      %p43 = por %p41, %p42
      %p45 = scmp.ne.s32.totalorder %s28, %s44
      %p46 = scmp.eq.s32.totalorder %s20, 0
      %p47 = por %p45, %p46
      %s49 = sadd.s32 %s48, 1
      %p52 = scmp.eq.s32.totalorder %s14, 1
      %p53 = scmp.ne.s32.totalorder %s48, %s50
      %p54 = scmp.eq.s32.totalorder %s14, 0
      %p55 = por %p53, %p54
      %p56 = scmp.ne.s32.totalorder %s48, %s50
      %p57 = scmp.eq.s32.totalorder %s19, 1
      %p58 = por %p56, %p57
      %p59 = scmp.ne.s32.totalorder %s50, %s51
      %p60 = scmp.eq.s32.totalorder %s19, 0
      %p61 = por %p59, %p60
      %p62 = scmp.ne.s32.totalorder %s50, %s51
      %p63 = scmp.eq.s32.totalorder %s20, 1
      %p64 = por %p62, %p63
      %p66 = scmp.ne.s32.totalorder %s51, %s65
      %p67 = scmp.eq.s32.totalorder %s20, 0
      %p68 = por %p66, %p67
      %s70 = sadd.s32 %s69, 1
      %p73 = scmp.eq.s32.totalorder %s14, 1
      %p74 = scmp.ne.s32.totalorder %s69, %s71
      %p75 = scmp.eq.s32.totalorder %s14, 0
      %p76 = por %p74, %p75
      %p77 = scmp.ne.s32.totalorder %s69, %s71
      %p78 = scmp.eq.s32.totalorder %s19, 1
      %p79 = por %p77, %p78
      %p80 = scmp.ne.s32.totalorder %s71, %s72
      %p81 = scmp.eq.s32.totalorder %s19, 0
      %p82 = por %p80, %p81
      %p83 = scmp.ne.s32.totalorder %s71, %s72
      %p84 = scmp.eq.s32.totalorder %s20, 1
      %p85 = por %p83, %p84
      %p87 = scmp.ne.s32.totalorder %s72, %s86
      %p88 = scmp.eq.s32.totalorder %s20, 0
      %p89 = por %p87, %p88
      %s91 = sadd.s32 %s90, 1
      %p94 = scmp.eq.s32.totalorder %s14, 1
      %p95 = scmp.ne.s32.totalorder %s90, %s92
      %p96 = scmp.eq.s32.totalorder %s14, 0
      %p97 = por %p95, %p96
      %p98 = scmp.ne.s32.totalorder %s90, %s92
      %p99 = scmp.eq.s32.totalorder %s19, 1
      %p100 = por %p98, %p99
      %p101 = scmp.ne.s32.totalorder %s92, %s93
      %p102 = scmp.eq.s32.totalorder %s19, 0
      %p103 = por %p101, %p102
      %p104 = scmp.ne.s32.totalorder %s92, %s93
      %p105 = scmp.eq.s32.totalorder %s20, 1
      %p106 = por %p104, %p105
      %p108 = scmp.ne.s32.totalorder %s93, %s107
      %p109 = scmp.eq.s32.totalorder %s20, 0
      %p110 = por %p108, %p109
      %s112 = sadd.s32 %s111, 1
      %p115 = scmp.eq.s32.totalorder %s14, 1
      %p116 = scmp.ne.s32.totalorder %s111, %s113
      %p117 = scmp.eq.s32.totalorder %s14, 0
      %p118 = por %p116, %p117
      %p119 = scmp.ne.s32.totalorder %s111, %s113
      %p120 = scmp.eq.s32.totalorder %s19, 1
      %p121 = por %p119, %p120
      %p122 = scmp.ne.s32.totalorder %s113, %s114
      %p123 = scmp.eq.s32.totalorder %s19, 0
      %p124 = por %p122, %p123
      %p125 = scmp.ne.s32.totalorder %s113, %s114
      %p126 = scmp.eq.s32.totalorder %s20, 1
      %p127 = por %p125, %p126
      %p129 = scmp.ne.s32.totalorder %s114, %s128
      %p130 = scmp.eq.s32.totalorder %s20, 0
      %p131 = por %p129, %p130
      %s132 = ssub.s32 %s14, %s21
      %p133 = scmp.eq.s32.totalorder %s132, 0
      %s135 = sadd.s32 %s134, 1
      %s136 = scalar_select %p133, %s134, %s135
      %p139 = pneg %p133
      %p140 = scmp.eq.s32.totalorder %s14, 1
      %p141 = por %p139, %p140
      %p142 = scmp.ne.s32.totalorder %s134, %s137
      %p143 = scmp.eq.s32.totalorder %s14, 0
      %p144 = por %p142, %p143
      %p145 = scmp.ne.s32.totalorder %s134, %s137
      %p146 = scmp.eq.s32.totalorder %s19, 1
      %p147 = por %p145, %p146
      %p148 = scmp.ne.s32.totalorder %s137, %s138
      %p149 = scmp.eq.s32.totalorder %s19, 0
      %p150 = por %p148, %p149
      %p151 = scmp.ne.s32.totalorder %s137, %s138
      %p152 = scmp.eq.s32.totalorder %s20, 1
      %p153 = por %p151, %p152
      %p155 = scmp.ne.s32.totalorder %s138, %s154
      %p156 = scmp.eq.s32.totalorder %s20, 0
      %p157 = por %p155, %p156
      %p158 = scmp.le.s32.totalorder 1, %s14
      %p159 = scmp.lt.s32.totalorder %s14, 3
      %p160 = pnand %p158, %p159
      %p161 = pneg %p160
      // Predicated region
      $region9: #{self_attention.1} parent=5 // pred_check
        _
      $region10: #{self_attention.1} parent=5 // pred_check_branch
        %163 = sbr.rel (%p160) target = $region12
      $region11: #{self_attention.1} parent=5 // pred_region
        %s164 = ssub.s32 %s14, 1
        // Predicated region
        $region13: #{self_attention.1} parent=11 // pred_check
          %p165 = pneg %p61
        $region14: #{self_attention.1} parent=11 // pred_check_branch
          %167 = sbr.rel (%p165) target = $region16
        $region15: #{self_attention.1} parent=11 // pred_region
          _
        $region16: #{self_attention.1} parent=11 // pred_fallthru
          _
        // Predicated region
        $region17: #{self_attention.1} parent=11 // pred_check
          %p168 = pneg %p82
        $region18: #{self_attention.1} parent=11 // pred_check_branch
          %170 = sbr.rel (%p168) target = $region20
        $region19: #{self_attention.1} parent=11 // pred_region
          _
        $region20: #{self_attention.1} parent=11 // pred_fallthru
          _
        // Predicated region
        $region21: #{self_attention.1} parent=11 // pred_check
          %p171 = pneg %p103
        $region22: #{self_attention.1} parent=11 // pred_check_branch
          %173 = sbr.rel (%p171) target = $region24
        $region23: #{self_attention.1} parent=11 // pred_region
          _
        $region24: #{self_attention.1} parent=11 // pred_fallthru
          _
        // Predicated region
        $region25: #{self_attention.1} parent=11 // pred_check
          %p174 = pneg %p124
        $region26: #{self_attention.1} parent=11 // pred_check_branch
          %176 = sbr.rel (%p174) target = $region28
        $region27: #{self_attention.1} parent=11 // pred_region
          _
        $region28: #{self_attention.1} parent=11 // pred_fallthru
          _
      $region12: #{self_attention.1} parent=5 // pred_fallthru
        _
      %p177 = scmp.lt.s32.totalorder %s14, 2
      // Predicated region
      $region29: #{self_attention.1} parent=5 // pred_check
        %p178 = pneg %p177
      $region30: #{self_attention.1} parent=5 // pred_check_branch
        %180 = sbr.rel (%p178) target = $region32
      $region31: #{self_attention.1} parent=5 // pred_region
        // Predicated region
        $region33: #{self_attention.1} parent=31 // pred_check
          %p181 = pneg %p34
        $region34: #{self_attention.1} parent=31 // pred_check_branch
          %183 = sbr.rel (%p181) target = $region36
        $region35: #{self_attention.1} parent=31 // pred_region
          %s184 = smul.u32 2, %s14
          %p185 = scmp.lt.s32.totalorder %s184, 3
          %s186 = scalar_select %p185, %s184, 3
          %s187 = smul.addr %s186, 4
          %s188 = smul.addr %s187, 8
          %s189 = scalar_lea.vmem %s0, %s188
          %s190 = smul.u32 2, %s14
        $region36: #{self_attention.1} parent=31 // pred_fallthru
          _
      $region32: #{self_attention.1} parent=5 // pred_fallthru
        _
      %p191 = scmp.le.s32.totalorder 1, %s14
      %p192 = scmp.lt.s32.totalorder %s14, 3
      %p193 = pnand %p191, %p192
      %p194 = pneg %p193
      // Predicated region
      $region37: #{self_attention.1} parent=5 // pred_check
        _
      $region38: #{self_attention.1} parent=5 // pred_check_branch
        %196 = sbr.rel (%p193) target = $region40
      $region39: #{self_attention.1} parent=5 // pred_region
        %s197 = ssub.s32 %s14, 1
        %s198 = smul.u32 2, %s19
        %p199 = scmp.lt.s32.totalorder %s198, 3
        %s200 = scalar_select %p199, %s198, 3
        %s201 = smul.addr %s200, 4
        %s202 = smul.addr %s201, 8
        %s203 = scalar_lea.vmem %s0, %s202
        %p204 = pneg %p40
        %p205 = pneg %p37
        %p206 = pneg %p61
        %p207 = pneg %p58
        %p208 = pneg %p82
        %p209 = pneg %p79
        %p210 = pneg %p103
        %p211 = pneg %p100
        %p212 = pneg %p124
        %p213 = pneg %p121
        %p214 = pneg %p150
        %p215 = pneg %p147
        %s216 = sand.u32 %s137, 1
        %s217 = scalar_lea.sflag [#allocation3], %s216
        %s218 = sand.u32 %s137, 1
        %s219 = smul.addr %s218, 64
        %s220 = scalar_lea.vmem [#allocation2], %s219
        %s221 = smul.u32 2, %s19
        %p222 = scmp.lt.s32.totalorder %s221, 3
        %s223 = scalar_select %p222, %s221, 3
        %s224 = smul.addr %s223, 4
        %s225 = smul.addr %s224, 8
        %s226 = scalar_lea.vmem %s0, %s225
        %s227 = smul.u32 2, %s19
        %s228 = smul.u32 2, %s19
        %v230 = vld [vmem:[%s226] sm:$0xff]
        %v231 = vld [vmem:[%s226 + $0x8] sm:$0xff]
        %v232 = vld [vmem:[%s226 + $0x10] sm:$0xff]
        %v233 = vld [vmem:[%s226 + $0x18] sm:$0xff]
        %v234 = vld [vmem:[%s226 + $0x20] sm:$0xff]
        %v235 = vld [vmem:[%s226 + $0x28] sm:$0xff]
        %v236 = vld [vmem:[%s226 + $0x30] sm:$0xff]
        %v237 = vld [vmem:[%s226 + $0x38] sm:$0xff]
        %v238 = vpack.c.bf16 %v231, %v230
        %v239 = vpack.c.bf16 %v233, %v232
        %v240 = vpack.c.bf16 %v235, %v234
        %v241 = vpack.c.bf16 %v237, %v236
        %v242 = vld [vmem:[%s1] sm:$0xff]
        %v243 = vld [vmem:[%s1 + $0x8] sm:$0xff]
        %v244 = vld [vmem:[%s1 + $0x10] sm:$0xff]
        %v245 = vld [vmem:[%s1 + $0x18] sm:$0xff]
        %v246 = vld [vmem:[%s1 + $0x20] sm:$0xff]
        %v247 = vld [vmem:[%s1 + $0x28] sm:$0xff]
        %v248 = vld [vmem:[%s1 + $0x30] sm:$0xff]
        %v249 = vld [vmem:[%s1 + $0x38] sm:$0xff]
        %v250 = vld [vmem:[%s1 + $0x40] sm:$0xff]
        %v251 = vld [vmem:[%s1 + $0x48] sm:$0xff]
        %v252 = vld [vmem:[%s1 + $0x50] sm:$0xff]
        %v253 = vld [vmem:[%s1 + $0x58] sm:$0xff]
        %v254 = vld [vmem:[%s1 + $0x60] sm:$0xff]
        %v255 = vld [vmem:[%s1 + $0x68] sm:$0xff]
        %v256 = vld [vmem:[%s1 + $0x70] sm:$0xff]
        %v257 = vld [vmem:[%s1 + $0x78] sm:$0xff]
        %v258 = vld [vmem:[%s2] sm:$0x3]
        %v260 = vlaneseq
        %v261 = vshrl.u32 %v260, 7
        %v262 = vsub.s32 0, %v261
        %v263 = vrot.slane %v258, %v262
        %v264 = vlaneseq
        %v265 = vshrl.u32 %v264, 7
        %v266 = vsub.s32 1, %v265
        %v267 = vrot.slane %v258, %v266
        %v286 = vunpack.c.l.b16 %v242
        %v287 = vunpack.c.h.b16 %v242
        %v288 = vunpack.c.l.b16 %v243
        %v289 = vunpack.c.h.b16 %v243
        %v290 = vunpack.c.l.b16 %v244
        %v291 = vunpack.c.h.b16 %v244
        %v292 = vunpack.c.l.b16 %v245
        %v293 = vunpack.c.h.b16 %v245
        %v294 = vunpack.c.l.b16 %v246
        %v295 = vunpack.c.h.b16 %v246
        %v296 = vunpack.c.l.b16 %v247
        %v297 = vunpack.c.h.b16 %v247
        %v298 = vunpack.c.l.b16 %v248
        %v299 = vunpack.c.h.b16 %v248
        %v300 = vunpack.c.l.b16 %v249
        %v301 = vunpack.c.h.b16 %v249
        %v302 = vunpack.c.l.b16 %v250
        %v303 = vunpack.c.h.b16 %v250
        %v304 = vunpack.c.l.b16 %v251
        %v305 = vunpack.c.h.b16 %v251
        %v306 = vunpack.c.l.b16 %v252
        %v307 = vunpack.c.h.b16 %v252
        %v308 = vunpack.c.l.b16 %v253
        %v309 = vunpack.c.h.b16 %v253
        %v310 = vunpack.c.l.b16 %v254
        %v311 = vunpack.c.h.b16 %v254
        %v312 = vunpack.c.l.b16 %v255
        %v313 = vunpack.c.h.b16 %v255
        %v314 = vunpack.c.l.b16 %v256
        %v315 = vunpack.c.h.b16 %v256
        %v316 = vunpack.c.l.b16 %v257
        %v317 = vunpack.c.h.b16 %v257
        %v318 = vpack.c.b16 %v288, %v286
        %v319 = vpack.c.b16 %v289, %v287
        %v320 = vpack.c.b16 %v292, %v290
        %v321 = vpack.c.b16 %v293, %v291
        %v322 = vpack.c.b16 %v296, %v294
        %v323 = vpack.c.b16 %v297, %v295
        %v324 = vpack.c.b16 %v300, %v298
        %v325 = vpack.c.b16 %v301, %v299
        %v326 = vpack.c.b16 %v304, %v302
        %v327 = vpack.c.b16 %v305, %v303
        %v328 = vpack.c.b16 %v308, %v306
        %v329 = vpack.c.b16 %v309, %v307
        %v330 = vpack.c.b16 %v312, %v310
        %v331 = vpack.c.b16 %v313, %v311
        %v332 = vpack.c.b16 %v316, %v314
        %v333 = vpack.c.b16 %v317, %v315
        %350 = vmatprep.subr.bf16.mxu0 %v319
        %351 = vmatpush1.bf16.msra.mxu0 %v318
        %352 = vmatprep.subr.bf16.mxu0 %v321
        %353 = vmatpush1.bf16.msra.mxu0 %v320
        %354 = vmatprep.subr.bf16.mxu0 %v323
        %355 = vmatpush1.bf16.msra.mxu0 %v322
        %356 = vmatprep.subr.bf16.mxu0 %v325
        %357 = vmatpush1.bf16.msra.mxu0 %v324
        %358 = vmatprep.subr.bf16.mxu0 %v327
        %359 = vmatpush1.bf16.msra.mxu0 %v326
        %360 = vmatprep.subr.bf16.mxu0 %v329
        %361 = vmatpush1.bf16.msra.mxu0 %v328
        %362 = vmatprep.subr.bf16.mxu0 %v331
        %363 = vmatpush1.bf16.msra.mxu0 %v330
        %364 = vmatprep.subr.bf16.mxu0 %v333
        %365 = vmatpush1.bf16.msra.mxu0 %v332
        %366 = vmatprep.subr.bf16.mxu0 0
        %367 = vmatpush1.bf16.msra.mxu0 0
        %368 = vmatprep.subr.bf16.mxu0 0
        %369 = vmatpush1.bf16.msra.mxu0 0
        %370 = vmatprep.subr.bf16.mxu0 0
        %371 = vmatpush1.bf16.msra.mxu0 0
        %372 = vmatprep.subr.bf16.mxu0 0
        %373 = vmatpush1.bf16.msra.mxu0 0
        %374 = vmatprep.subr.bf16.mxu0 0
        %375 = vmatpush1.bf16.msra.mxu0 0
        %376 = vmatprep.subr.bf16.mxu0 0
        %377 = vmatpush1.bf16.msra.mxu0 0
        %378 = vmatprep.subr.bf16.mxu0 0
        %379 = vmatpush1.bf16.msra.mxu0 0
        %380 = vmatprep.subr.bf16.mxu0 0
        %381 = vmatpush1.bf16.msra.mxu0 0
        %382 = vmatprep.mubr.bf16.mxu0 0
        %383 = vmatmul.mubr.bf16.gmra.mrb[0].mxu0 %v238
        %v384 = vpop.f32.mrb[0].mxu0
        %v385 = vadd.f32 %v263, %v384
        %v386 = vpop.f32.mrb[0].mxu0
        %v387 = vadd.f32 %v267, %v386
        %v388 = vpop.f32.mrb[0].mxu0
        %v389 = vadd.f32 %v263, %v388
        %v390 = vpop.f32.mrb[0].mxu0
        %v391 = vadd.f32 %v267, %v390
        %392 = vmatprep.mubr.bf16.mxu0 0
        %393 = vmatmul.mubr.bf16.gmra.mrb[0].mxu0 %v239
        %v394 = vpop.f32.mrb[0].mxu0
        %v395 = vadd.f32 %v263, %v394
        %v396 = vpop.f32.mrb[0].mxu0
        %v397 = vadd.f32 %v267, %v396
        %v398 = vpop.f32.mrb[0].mxu0
        %v399 = vadd.f32 %v263, %v398
        %v400 = vpop.f32.mrb[0].mxu0
        %v401 = vadd.f32 %v267, %v400
        %402 = vmatprep.mubr.bf16.mxu0 0
        %403 = vmatmul.mubr.bf16.gmra.mrb[0].mxu0 %v240
        %v404 = vpop.f32.mrb[0].mxu0
        %v405 = vadd.f32 %v263, %v404
        %v406 = vpop.f32.mrb[0].mxu0
        %v407 = vadd.f32 %v267, %v406
        %v408 = vpop.f32.mrb[0].mxu0
        %v409 = vadd.f32 %v263, %v408
        %v410 = vpop.f32.mrb[0].mxu0
        %v411 = vadd.f32 %v267, %v410
        %412 = vmatprep.mubr.bf16.mxu0 0
        %413 = vmatmul.mubr.bf16.gmra.mrb[0].mxu0 %v241
        %v414 = vpop.f32.mrb[0].mxu0
        %v415 = vadd.f32 %v263, %v414
        %v416 = vpop.f32.mrb[0].mxu0
        %v417 = vadd.f32 %v267, %v416
        %v418 = vpop.f32.mrb[0].mxu0
        %v419 = vadd.f32 %v263, %v418
        %v420 = vpop.f32.mrb[0].mxu0
        %v421 = vadd.f32 %v267, %v420
        %422 = vdwg.mxu0
        %v423 = vtanh.pop %v385
        %v424 = vtanh.pop %v389
        %v425 = vtanh.pop %v395
        %v426 = vtanh.pop %v399
        %v427 = vtanh.pop %v405
        %v428 = vtanh.pop %v409
        %v429 = vtanh.pop %v415
        %v430 = vtanh.pop %v419
        %v431 = vmax.f32 %v423, %v425
        %v432 = vmax.f32 %v424, %v426
        %v433 = vmax.f32 %v431, %v432
        %v434 = vrot.slane %v433, 4
        %v435 = vmax.f32 %v433, %v434
        %v436 = vrot.slane %v435, 2
        %v437 = vmax.f32 %v435, %v436
        %v438 = vrot.slane %v437, 1
        %v439 = vmax.f32 %v437, %v438
        %v440 = vmax.f32 %v427, %v429
        %v441 = vmax.f32 %v428, %v430
        %v442 = vmax.f32 %v440, %v441
        %v443 = vrot.slane %v442, 4
        %v444 = vmax.f32 %v442, %v443
        %v445 = vrot.slane %v444, 2
        %v446 = vmax.f32 %v444, %v445
        %v447 = vrot.slane %v446, 1
        %v448 = vmax.f32 %v446, %v447
        %v449 = vsub.f32 %v423, %v439
        %v450 = vsub.f32 %v424, %v439
        %v451 = vsub.f32 %v425, %v439
        %v452 = vsub.f32 %v426, %v439
        %v453 = vsub.f32 %v427, %v448
        %v454 = vsub.f32 %v428, %v448
        %v455 = vsub.f32 %v429, %v448
        %v456 = vsub.f32 %v430, %v448
        %v457 = vmul.f32 %v449, 1.442695
        %v458 = vpow.pop %v457
        %v459 = vmul.f32 %v450, 1.442695
        %v460 = vpow.pop %v459
        %v461 = vmul.f32 %v451, 1.442695
        %v462 = vpow.pop %v461
        %v463 = vmul.f32 %v452, 1.442695
        %v464 = vpow.pop %v463
        %v465 = vmul.f32 %v453, 1.442695
        %v466 = vpow.pop %v465
        %v467 = vmul.f32 %v454, 1.442695
        %v468 = vpow.pop %v467
        %v469 = vmul.f32 %v455, 1.442695
        %v470 = vpow.pop %v469
        %v471 = vmul.f32 %v456, 1.442695
        %v472 = vpow.pop %v471
        %v473 = vadd.f32 %v458, %v460
        %v474 = vadd.f32 %v473, %v462
        %v475 = vadd.f32 %v474, %v464
        %v476 = vrot.slane %v475, 4
        %v477 = vadd.f32 %v475, %v476
        %v478 = vrot.slane %v477, 2
        %v479 = vadd.f32 %v477, %v478
        %v480 = vrot.slane %v479, 1
        %v481 = vadd.f32 %v479, %v480
        %v482 = vadd.f32 %v466, %v468
        %v483 = vadd.f32 %v482, %v470
        %v484 = vadd.f32 %v483, %v472
        %v485 = vrot.slane %v484, 4
        %v486 = vadd.f32 %v484, %v485
        %v487 = vrot.slane %v486, 2
        %v488 = vadd.f32 %v486, %v487
        %v489 = vrot.slane %v488, 1
        %v490 = vadd.f32 %v488, %v489
        %v491 = vrcp.pop %v481
        %v492 = vrcp.pop %v490
        %v493 = vmul.f32 %v458, %v491
        %v494 = vmul.f32 %v460, %v491
        %v495 = vmul.f32 %v462, %v491
        %v496 = vmul.f32 %v464, %v491
        %v497 = vmul.f32 %v466, %v492
        %v498 = vmul.f32 %v468, %v492
        %v499 = vmul.f32 %v470, %v492
        %v500 = vmul.f32 %v472, %v492
        %v501 = vxor.u32 %v387, 2147483648
        %v502 = vxor.u32 %v391, 2147483648
        %v503 = vxor.u32 %v397, 2147483648
        %v504 = vxor.u32 %v401, 2147483648
        %v505 = vxor.u32 %v407, 2147483648
        %v506 = vxor.u32 %v411, 2147483648
        %v507 = vxor.u32 %v417, 2147483648
        %v508 = vxor.u32 %v421, 2147483648
        %v509 = vmul.f32 %v501, 1.442695
        %v510 = vpow.pop %v509
        %v511 = vmul.f32 %v502, 1.442695
        %v512 = vpow.pop %v511
        %v513 = vmul.f32 %v503, 1.442695
        %v514 = vpow.pop %v513
        %v515 = vmul.f32 %v504, 1.442695
        %v516 = vpow.pop %v515
        %v517 = vmul.f32 %v505, 1.442695
        %v518 = vpow.pop %v517
        %v519 = vmul.f32 %v506, 1.442695
        %v520 = vpow.pop %v519
        %v521 = vmul.f32 %v507, 1.442695
        %v522 = vpow.pop %v521
        %v523 = vmul.f32 %v508, 1.442695
        %v524 = vpow.pop %v523
        %v525 = vadd.f32 %v510, 1.0
        %v526 = vadd.f32 %v512, 1.0
        %v527 = vadd.f32 %v514, 1.0
        %v528 = vadd.f32 %v516, 1.0
        %v529 = vadd.f32 %v518, 1.0
        %v530 = vadd.f32 %v520, 1.0
        %v531 = vadd.f32 %v522, 1.0
        %v532 = vadd.f32 %v524, 1.0
        %v533 = vrcp.pop %v525
        %v534 = vmul.f32 1.0, %v533
        %v535 = vrcp.pop %v526
        %v536 = vmul.f32 1.0, %v535
        %v537 = vrcp.pop %v527
        %v538 = vmul.f32 1.0, %v537
        %v539 = vrcp.pop %v528
        %v540 = vmul.f32 1.0, %v539
        %v541 = vrcp.pop %v529
        %v542 = vmul.f32 1.0, %v541
        %v543 = vrcp.pop %v530
        %v544 = vmul.f32 1.0, %v543
        %v545 = vrcp.pop %v531
        %v546 = vmul.f32 1.0, %v545
        %v547 = vrcp.pop %v532
        %v548 = vmul.f32 1.0, %v547
        %v549 = vmul.f32 %v493, %v534
        %v550 = vmul.f32 %v494, %v536
        %v551 = vmul.f32 %v495, %v538
        %v552 = vmul.f32 %v496, %v540
        %v553 = vmul.f32 %v497, %v542
        %v554 = vmul.f32 %v498, %v544
        %v555 = vmul.f32 %v499, %v546
        %v556 = vmul.f32 %v500, %v548
        %v557 = vpack.c.bf16 %v550, %v549
        %v558 = vpack.c.bf16 %v552, %v551
        %v559 = vpack.c.bf16 %v554, %v553
        %v560 = vpack.c.bf16 %v556, %v555
        %v561 = vld [vmem:[%s3] sm:$0xf]
        %v562 = vld [vmem:[%s3 + $0x4] sm:$0xf]
        %v563 = vld [vmem:[%s3 + $0x8] sm:$0xf]
        %v564 = vld [vmem:[%s3 + $0xc] sm:$0xf]
        %v565 = vld [vmem:[%s3 + $0x10] sm:$0xf]
        %v566 = vld [vmem:[%s3 + $0x14] sm:$0xf]
        %v567 = vld [vmem:[%s3 + $0x18] sm:$0xf]
        %v568 = vld [vmem:[%s3 + $0x1c] sm:$0xf]
        %v569 = vld [vmem:[%s3 + $0x20] sm:$0xf]
        %v570 = vld [vmem:[%s3 + $0x24] sm:$0xf]
        %v571 = vld [vmem:[%s3 + $0x28] sm:$0xf]
        %v572 = vld [vmem:[%s3 + $0x2c] sm:$0xf]
        %v573 = vld [vmem:[%s3 + $0x30] sm:$0xf]
        %v574 = vld [vmem:[%s3 + $0x34] sm:$0xf]
        %v575 = vld [vmem:[%s3 + $0x38] sm:$0xf]
        %v576 = vld [vmem:[%s3 + $0x3c] sm:$0xf]
        %v577 = vld [vmem:[%s4] sm:$0x1]
        %v579 = vlaneseq
        %v580 = vshrl.u32 %v579, 7
        %v581 = vsub.s32 0, %v580
        %v582 = vrot.slane %v577, %v581
        %v600 = vunpack.c.l.b16 %v561
        %v601 = vunpack.c.l.b16 %v562
        %v602 = vunpack.c.l.b16 %v563
        %v603 = vunpack.c.l.b16 %v564
        %v604 = vunpack.c.l.b16 %v565
        %v605 = vunpack.c.l.b16 %v566
        %v606 = vunpack.c.l.b16 %v567
        %v607 = vunpack.c.l.b16 %v568
        %v608 = vunpack.c.l.b16 %v569
        %v609 = vunpack.c.l.b16 %v570
        %v610 = vunpack.c.l.b16 %v571
        %v611 = vunpack.c.l.b16 %v572
        %v612 = vunpack.c.l.b16 %v573
        %v613 = vunpack.c.l.b16 %v574
        %v614 = vunpack.c.l.b16 %v575
        %v615 = vunpack.c.l.b16 %v576
        %v616 = vpack.c.b16 %v601, %v600
        %v617 = vpack.c.b16 %v603, %v602
        %v618 = vpack.c.b16 %v605, %v604
        %v619 = vpack.c.b16 %v607, %v606
        %v620 = vpack.c.b16 %v609, %v608
        %v621 = vpack.c.b16 %v611, %v610
        %v622 = vpack.c.b16 %v613, %v612
        %v623 = vpack.c.b16 %v615, %v614
        %632 = vmatprep.subr.bf16.mxu0 0
        %633 = vmatpush1.bf16.msra.mxu0 %v616
        %634 = vmatprep.subr.bf16.mxu0 0
        %635 = vmatpush1.bf16.msra.mxu0 %v617
        %636 = vmatprep.subr.bf16.mxu0 0
        %637 = vmatpush1.bf16.msra.mxu0 %v618
        %638 = vmatprep.subr.bf16.mxu0 0
        %639 = vmatpush1.bf16.msra.mxu0 %v619
        %640 = vmatprep.subr.bf16.mxu0 0
        %641 = vmatpush1.bf16.msra.mxu0 %v620
        %642 = vmatprep.subr.bf16.mxu0 0
        %643 = vmatpush1.bf16.msra.mxu0 %v621
        %644 = vmatprep.subr.bf16.mxu0 0
        %645 = vmatpush1.bf16.msra.mxu0 %v622
        %646 = vmatprep.subr.bf16.mxu0 0
        %647 = vmatpush1.bf16.msra.mxu0 %v623
        %648 = vmatprep.subr.bf16.mxu0 0
        %649 = vmatpush1.bf16.msra.mxu0 0
        %650 = vmatprep.subr.bf16.mxu0 0
        %651 = vmatpush1.bf16.msra.mxu0 0
        %652 = vmatprep.subr.bf16.mxu0 0
        %653 = vmatpush1.bf16.msra.mxu0 0
        %654 = vmatprep.subr.bf16.mxu0 0
        %655 = vmatpush1.bf16.msra.mxu0 0
        %656 = vmatprep.subr.bf16.mxu0 0
        %657 = vmatpush1.bf16.msra.mxu0 0
        %658 = vmatprep.subr.bf16.mxu0 0
        %659 = vmatpush1.bf16.msra.mxu0 0
        %660 = vmatprep.subr.bf16.mxu0 0
        %661 = vmatpush1.bf16.msra.mxu0 0
        %662 = vmatprep.subr.bf16.mxu0 0
        %663 = vmatpush1.bf16.msra.mxu0 0
        %664 = vmatprep.mubr.bf16.mxu0 0
        %665 = vmatmul.mubr.bf16.gmra.mrb[0].mxu0 %v557
        %v666 = vpop.f32.mrb[0].mxu0
        %v667 = vadd.f32 %v582, %v666
        %v668 = vpop.f32.mrb[0].mxu0
        %v669 = vpop.f32.mrb[0].mxu0
        %v670 = vadd.f32 %v582, %v669
        %v671 = vpop.f32.mrb[0].mxu0
        %672 = vmatprep.mubr.bf16.mxu0 0
        %673 = vmatmul.mubr.bf16.gmra.mrb[0].mxu0 %v558
        %v674 = vpop.f32.mrb[0].mxu0
        %v675 = vadd.f32 %v582, %v674
        %v676 = vpop.f32.mrb[0].mxu0
        %v677 = vpop.f32.mrb[0].mxu0
        %v678 = vadd.f32 %v582, %v677
        %v679 = vpop.f32.mrb[0].mxu0
        %680 = vmatprep.mubr.bf16.mxu0 0
        %681 = vmatmul.mubr.bf16.gmra.mrb[0].mxu0 %v559
        %v682 = vpop.f32.mrb[0].mxu0
        %v683 = vadd.f32 %v582, %v682
        %v684 = vpop.f32.mrb[0].mxu0
        %v685 = vpop.f32.mrb[0].mxu0
        %v686 = vadd.f32 %v582, %v685
        %v687 = vpop.f32.mrb[0].mxu0
        %688 = vmatprep.mubr.bf16.mxu0 0
        %689 = vmatmul.mubr.bf16.gmra.mrb[0].mxu0 %v560
        %v690 = vpop.f32.mrb[0].mxu0
        %v691 = vadd.f32 %v582, %v690
        %v692 = vpop.f32.mrb[0].mxu0
        %v693 = vpop.f32.mrb[0].mxu0
        %v694 = vadd.f32 %v582, %v693
        %v695 = vpop.f32.mrb[0].mxu0
        %696 = vdwg.mxu0
        %v697 = vadd.f32 %v230, %v667
        %v698 = vadd.f32 %v231, %v670
        %v699 = vadd.f32 %v232, %v675
        %v700 = vadd.f32 %v233, %v678
        %v701 = vadd.f32 %v234, %v683
        %v702 = vadd.f32 %v235, %v686
        %v703 = vadd.f32 %v236, %v691
        %v704 = vadd.f32 %v237, %v694
        %705 = vst [vmem:[%s220] sm:$0xff] %v697
        %706 = vst [vmem:[%s220 + $0x8] sm:$0xff] %v698
        %707 = vst [vmem:[%s220 + $0x10] sm:$0xff] %v699
        %708 = vst [vmem:[%s220 + $0x18] sm:$0xff] %v700
        %709 = vst [vmem:[%s220 + $0x20] sm:$0xff] %v701
        %710 = vst [vmem:[%s220 + $0x28] sm:$0xff] %v702
        %711 = vst [vmem:[%s220 + $0x30] sm:$0xff] %v703
        %712 = vst [vmem:[%s220 + $0x38] sm:$0xff] %v704
        %s713 = sand.u32 %s137, 1
        %s714 = scalar_lea.sflag [#allocation3], %s713
        %s715 = sand.u32 %s137, 1
        %s716 = smul.addr %s715, 64
        %s717 = scalar_lea.vmem [#allocation2], %s716
        // Predicated region
        $region41: #{self_attention.1} parent=39 // pred_check
          %p718 = pneg %p147
        $region42: #{self_attention.1} parent=39 // pred_check_branch
          %720 = sbr.rel (%p718) target = $region44
        $region43: #{self_attention.1} parent=39 // pred_region
          %s721 = smul.u32 2, %s19
          %s723 = ssub.s32 1024, 1024
          %724 = vsyncadd %s714, %s723
          %s725 = smul.addr %s721, 4
          %s726 = smul.addr %s725, 128
          %s727 = scalar_lea.hbm %s5, %s726
          %s728 = sshll.u32 %s717, 4
          %s729 = int_to_ptr.vmem [resolvable:$true] %s728
          %734 = dma.vmem_to_hbm [thread:$0]  %s729, 1024, %s727, %s714, 128, 128, 8
        $region44: #{self_attention.1} parent=39 // pred_fallthru
          _
      $region40: #{self_attention.1} parent=5 // pred_fallthru
        _
      %p735 = scmp.le.s32.totalorder 2, %s14
      // Predicated region
      $region45: #{self_attention.1} parent=5 // pred_check
        %p736 = pneg %p735
      $region46: #{self_attention.1} parent=5 // pred_check_branch
        %738 = sbr.rel (%p736) target = $region48
      $region47: #{self_attention.1} parent=5 // pred_region
        %s739 = ssub.s32 %s14, 2
        // Predicated region
        $region49: #{self_attention.1} parent=47 // pred_check
          %p740 = pneg %p153
        $region50: #{self_attention.1} parent=47 // pred_check_branch
          %742 = sbr.rel (%p740) target = $region52
        $region51: #{self_attention.1} parent=47 // pred_region
          %s743 = sand.u32 %s138, 1
          %s744 = scalar_lea.sflag [#allocation3], %s743
          %s745 = sand.u32 %s138, 1
          %s746 = smul.addr %s745, 64
          %s747 = scalar_lea.vmem [#allocation2], %s746
          %748 = dma.done %s744, 1024
        $region52: #{self_attention.1} parent=47 // pred_fallthru
          _
      $region48: #{self_attention.1} parent=5 // pred_fallthru
        _
    $region6: #{self_attention.1} parent=1 // loop_footer
      %s18 = sadd.s32 1, %s14
    $region7: #{self_attention.1} parent=1 // loop_footer_branch
      %13 = sbr.rel target = $region3
    $region8: #{self_attention.1} parent=1 // loop_exit
      _
    %749 = vsyncpa [#allocation3], 1
    %s750 = scalar_lea.sflag [#allocation3], 1
    %751 = vsyncpa %s750, 1

</llo_original>
